<compile_context>
chip_gen: v6e
topology: v6e:2x2x1
jax: 0.10.0
libtpu: 0.0.40
codegen_flags: <defaults>
</compile_context>

<pallas_src>
import functools
import math

import jax
import jax.numpy as jnp
from jax.experimental import pallas as pl
from jax.experimental.pallas import tpu as pltpu


# ----------------------------- Pallas kernel -----------------------------
def _cmapss_rnn_kernel(x_ref,     # (T+1, tb, I) time-major batch tile, last step zeros
                       xw_ref,    # (I, 2H)   [wih0^T | 0]
                       bcat_ref,  # (1, 2H)   [bih0+bhh0 , bih1+bhh1]
                       w_ref,     # (2H, 2H)  [[whh0^T, wih1^T], [0, whh1^T]]
                       fcw_ref,   # (1, 2H)   [0 , fc.weight row]
                       fcb_ref,   # (1, 1)    fc bias
                       o_ref,     # (tb, 1)   output tile
                       *, mxu_dtype):
    Tp1, tb, I = x_ref.shape
    T = Tp1 - 1
    H2 = w_ref.shape[0]
    H = H2 // 2

    # hoisted weight load (once, before the recurrence)
    W = w_ref[...].astype(mxu_dtype)

    # Layer-0 input projection for all time steps in ONE MXU call (off the
    # serial chain).  xb row block t = [x_t @ wih0^T + b0 , b1]; the padded
    # last block is [b0, b1].  tb is a sublane multiple so the reshape is a
    # layout no-op.
    x_all = x_ref[...].reshape(Tp1 * tb, I).astype(mxu_dtype)
    xb = jnp.dot(x_all, xw_ref[...].astype(mxu_dtype),
                 preferred_element_type=jnp.float32) + bcat_ref[...]

    # ---- prologue (t = 0): h0_0 = tanh(xproj_0), h1_{-1} = 0 ----
    # (skips the h0 @ whh0 matmul against the all-zero initial state)
    left_half = jax.lax.broadcasted_iota(jnp.int32, (tb, H2), 1) < H
    S = jnp.where(left_half, jnp.tanh(xb[0:tb, :]), 0.0)   # S_0 = [h0_0, 0]

    # ---- wavefront recurrence: S_{s+1} = tanh(S_s @ W + [xproj_{s+1}, b1]) ----
    # S_s = [h0_s, h1_{s-1}]; one matmul + one tanh on the chain per step.
    # The final (zero-padded) step leaves h1_{T-1} in the right half of S.
    # T is small and static -> fully unrolled.
    # TODO(synk): for much larger T switch to lax.fori_loop(..., unroll=True)
    # with xb in a VMEM scratch so live ranges stay bounded.
    for s in range(T):
        S = jnp.tanh(
            jnp.dot(S.astype(mxu_dtype), W, preferred_element_type=jnp.float32)
            + xb[(s + 1) * tb:(s + 2) * tb, :])

    # out[:, -1, :] -> Dropout (identity at eval) -> Linear(H, 1)
    # fc as VPU multiply + XLU lane reduction; fcw_pad is zero over the h0 half.
    # TODO(synk): nn.Dropout is identity in eval mode; training-mode masking not implemented.
    o_ref[...] = (jnp.sum(S * fcw_ref[...], axis=-1, keepdims=True)
                  + fcb_ref[...]).astype(o_ref.dtype)


# ------------------------------- wrapper ---------------------------------
@functools.partial(jax.jit, static_argnames=("mxu_dtype",))
def cmapss_rnn_forward(x, params, *, mxu_dtype=jnp.float32):
    """x: (B, T, I) batch_first, float32.  Returns (B, 1).

    mxu_dtype=jnp.bfloat16 shortens each serialized MXU pass on v6e/v7x
    (re-validate tolerance); keep the f32 default on v5e.
    B should be a multiple of 8 (sublane tile) to avoid relayout copies.
    """
    B, T, I = x.shape
    H = params["whh0"].shape[0]
    H2 = 2 * H

    # time-major + one zero-padded time step for the epilogue wave step.
    # (negligible HBM traffic here; feed time-major upstream if T*B*I grows)
    x_tm = jnp.concatenate(
        [jnp.transpose(x, (1, 0, 2)), jnp.zeros((1, B, I), x.dtype)], axis=0)

    b0 = (params["bih0"] + params["bhh0"]).reshape(1, H)
    b1 = (params["bih1"] + params["bhh1"]).reshape(1, H)

    # layer-0 input weight padded to 2H output columns (right half zero)
    xw = jnp.concatenate([params["wih0"].T, jnp.zeros((I, H), jnp.float32)], axis=1)
    bcat = jnp.concatenate([b0, b1], axis=1)                           # (1, 2H)
    # wavefront weight: S @ W = [h0@whh0^T , h0@wih1^T + h1@whh1^T]
    W = jnp.block([[params["whh0"].T,            params["wih1"].T],
                   [jnp.zeros((H, H), jnp.float32), params["whh1"].T]])  # (2H, 2H)
    fcw_pad = jnp.concatenate([jnp.zeros((1, H), jnp.float32),
                               params["fcw"]], axis=1)                  # (1, 2H)
    fcb = params["fcb"].reshape(1, 1)

    # batch tiling: one grid step per tile; tiles are independent recurrences,
    # so on v7x they shard across both TensorCores.  grid=(1,) at small B.
    tb = 128 if (B > 128 and B % 128 == 0) else B
    grid = (B // tb,)

    kernel = functools.partial(_cmapss_rnn_kernel, mxu_dtype=mxu_dtype)
    return pl.pallas_call(
        kernel,
        out_shape=jax.ShapeDtypeStruct((B, 1), jnp.float32),
        grid=grid,
        in_specs=[
            pl.BlockSpec((T + 1, tb, I), lambda j: (0, j, 0)),
            pl.BlockSpec((I, H2), lambda j: (0, 0)),
            pl.BlockSpec((1, H2), lambda j: (0, 0)),
            pl.BlockSpec((H2, H2), lambda j: (0, 0)),
            pl.BlockSpec((1, H2), lambda j: (0, 0)),
            pl.BlockSpec((1, 1), lambda j: (0, 0)),
        ],
        out_specs=pl.BlockSpec((tb, 1), lambda j: (j, 0)),
        compiler_params=pltpu.CompilerParams(dimension_semantics=("parallel",)),
    )(x_tm, xw, bcat, W, fcw_pad, fcb)


# ------------------------- pure-JAX reference -----------------------------
def cmapss_rnn_reference(x, params):
    B, T, I = x.shape
    H = params["whh0"].shape[0]
    h0 = jnp.zeros((B, H), jnp.float32)
    h1 = jnp.zeros((B, H), jnp.float32)
    for t in range(T):
        xt = x[:, t, :]
        h0 = jnp.tanh(xt @ params["wih0"].T + params["bih0"]
                      + h0 @ params["whh0"].T + params["bhh0"])
        h1 = jnp.tanh(h0 @ params["wih1"].T + params["bih1"]
                      + h1 @ params["whh1"].T + params["bhh1"])
    return h1 @ params["fcw"].T + params["fcb"]


# ------------------------------ param init --------------------------------
def init_params(key, input_sz, hidden_sz):
    """Deterministic init mimicking PyTorch's U(-1/sqrt(H), 1/sqrt(H))."""
    k = 1.0 / math.sqrt(hidden_sz)
    keys = jax.random.split(key, 10)
    u = lambda kk, shape: jax.random.uniform(kk, shape, jnp.float32, -k, k)
    return {
        "wih0": u(keys[0], (hidden_sz, input_sz)),
        "whh0": u(keys[1], (hidden_sz, hidden_sz)),
        "bih0": u(keys[2], (hidden_sz,)),
        "bhh0": u(keys[3], (hidden_sz,)),
        "wih1": u(keys[4], (hidden_sz, hidden_sz)),
        "whh1": u(keys[5], (hidden_sz, hidden_sz)),
        "bih1": u(keys[6], (hidden_sz,)),
        "bhh1": u(keys[7], (hidden_sz,)),
        "fcw":  u(keys[8], (1, hidden_sz)),
        "fcb":  u(keys[9], (1,)),
    }


if __name__ == "__main__":
    # mc = {'num_layers': 2, 'input_sz': 16, 'hidden_size': 32, 'cuda': False, 'dropout': 0.1}
    B, T, I, H = 8, 8, 16, 32

    key = jax.random.PRNGKey(0)
    kx, kp = jax.random.split(key)
    x = jax.random.normal(kx, (B, T, I), jnp.float32)
    params = init_params(kp, I, H)

    out = jax.block_until_ready(cmapss_rnn_forward(x, params))

    ref = cmapss_rnn_reference(x, params)
    assert out.shape == (B, 1), out.shape
    assert jnp.allclose(out, ref, atol=1e-5, rtol=1e-5), (out, ref)

    print("KERNEL_OK")
</pallas_src>

<mosaic_0001>
module attributes {stable_mosaic.version = 11 : i64} {
  func.func @_cmapss_rnn_kernel(%arg0: i32, %arg1: memref<9x8x16xf32, #tpu.memory_space<vmem>>, %arg2: memref<16x64xf32, #tpu.memory_space<vmem>>, %arg3: memref<1x64xf32, #tpu.memory_space<vmem>>, %arg4: memref<64x64xf32, #tpu.memory_space<vmem>>, %arg5: memref<1x64xf32, #tpu.memory_space<vmem>>, %arg6: memref<1x1xf32, #tpu.memory_space<vmem>>, %arg7: memref<8x1xf32, #tpu.memory_space<vmem>>) attributes {dimension_semantics = [#tpu.dimension_semantics<parallel>], iteration_bounds = array<i64: 1>, scalar_prefetch = 0 : i64, scratch_operands = 0 : i64, tpu.core_type = #tpu.core_type<tc>, window_params = [{transform_indices = @transform_0, window_bounds = array<i64: 9, 8, 16>}, {pipeline_mode = #tpu.pipeline_mode<synchronous>, transform_indices = @transform_1, window_bounds = array<i64: 16, 64>}, {pipeline_mode = #tpu.pipeline_mode<synchronous>, transform_indices = @transform_2, window_bounds = array<i64: 1, 64>}, {pipeline_mode = #tpu.pipeline_mode<synchronous>, transform_indices = @transform_3, window_bounds = array<i64: 64, 64>}, {pipeline_mode = #tpu.pipeline_mode<synchronous>, transform_indices = @transform_4, window_bounds = array<i64: 1, 64>}, {pipeline_mode = #tpu.pipeline_mode<synchronous>, transform_indices = @transform_5, window_bounds = array<i64: 1, 1>}, {transform_indices = @transform_6, window_bounds = array<i64: 8, 1>}]} {
    %c0 = arith.constant 0 : index
    %c0_0 = arith.constant 0 : index
    %0 = vector.load %arg4[%c0, %c0_0] : memref<64x64xf32, #tpu.memory_space<vmem>>, vector<64x64xf32>
    %c0_1 = arith.constant 0 : index
    %c0_2 = arith.constant 0 : index
    %c0_3 = arith.constant 0 : index
    %1 = vector.load %arg1[%c0_1, %c0_2, %c0_3] : memref<9x8x16xf32, #tpu.memory_space<vmem>>, vector<9x8x16xf32>
    %2 = vector.shape_cast %1 : vector<9x8x16xf32> to vector<72x16xf32>
    %c0_4 = arith.constant 0 : index
    %c0_5 = arith.constant 0 : index
    %3 = vector.load %arg2[%c0_4, %c0_5] : memref<16x64xf32, #tpu.memory_space<vmem>>, vector<16x64xf32>
    %cst = arith.constant dense<0.000000e+00> : vector<72x64xf32>
    %4 = tpu.matmul %2, %3, %cst {dimension_numbers = #tpu.dot_dimension_numbers<[1], [0], [0], [1], [0, 0, 1, 1], [], []>} : vector<72x16xf32>, vector<16x64xf32>, vector<72x64xf32> -> vector<72x64xf32>
    %c0_6 = arith.constant 0 : index
    %c0_7 = arith.constant 0 : index
    %5 = vector.load %arg3[%c0_6, %c0_7] : memref<1x64xf32, #tpu.memory_space<vmem>>, vector<1x64xf32>
    %6 = vector.broadcast %5 : vector<1x64xf32> to vector<72x64xf32>
    %7 = arith.addf %4, %6 : vector<72x64xf32>
    %8 = tpu.iota {dimensions = array<i32: 1>} : vector<8x64xi32>
    %c32_i32 = arith.constant 32 : i32
    %9 = vector.broadcast %c32_i32 : i32 to vector<8x64xi32>
    %10 = arith.cmpi slt, %8, %9 : vector<8x64xi32>
    %11 = vector.extract_strided_slice %7 {offsets = [0, 0], sizes = [8, 64], strides = [1, 1]} : vector<72x64xf32> to vector<8x64xf32>
    %12 = math.tanh %11 : vector<8x64xf32>
    %cst_8 = arith.constant 0.000000e+00 : f32
    %13 = vector.broadcast %cst_8 : f32 to vector<8x64xf32>
    %14 = arith.select %10, %12, %13 : vector<8x64xi1>, vector<8x64xf32>
    %cst_9 = arith.constant dense<0.000000e+00> : vector<8x64xf32>
    %15 = tpu.matmul %14, %0, %cst_9 {dimension_numbers = #tpu.dot_dimension_numbers<[1], [0], [0], [1], [0, 0, 1, 1], [], []>} : vector<8x64xf32>, vector<64x64xf32>, vector<8x64xf32> -> vector<8x64xf32>
    %16 = vector.extract_strided_slice %7 {offsets = [8, 0], sizes = [8, 64], strides = [1, 1]} : vector<72x64xf32> to vector<8x64xf32>
    %17 = arith.addf %15, %16 : vector<8x64xf32>
    %18 = math.tanh %17 : vector<8x64xf32>
    %cst_10 = arith.constant dense<0.000000e+00> : vector<8x64xf32>
    %19 = tpu.matmul %18, %0, %cst_10 {dimension_numbers = #tpu.dot_dimension_numbers<[1], [0], [0], [1], [0, 0, 1, 1], [], []>} : vector<8x64xf32>, vector<64x64xf32>, vector<8x64xf32> -> vector<8x64xf32>
    %20 = vector.extract_strided_slice %7 {offsets = [16, 0], sizes = [8, 64], strides = [1, 1]} : vector<72x64xf32> to vector<8x64xf32>
    %21 = arith.addf %19, %20 : vector<8x64xf32>
    %22 = math.tanh %21 : vector<8x64xf32>
    %cst_11 = arith.constant dense<0.000000e+00> : vector<8x64xf32>
    %23 = tpu.matmul %22, %0, %cst_11 {dimension_numbers = #tpu.dot_dimension_numbers<[1], [0], [0], [1], [0, 0, 1, 1], [], []>} : vector<8x64xf32>, vector<64x64xf32>, vector<8x64xf32> -> vector<8x64xf32>
    %24 = vector.extract_strided_slice %7 {offsets = [24, 0], sizes = [8, 64], strides = [1, 1]} : vector<72x64xf32> to vector<8x64xf32>
    %25 = arith.addf %23, %24 : vector<8x64xf32>
    %26 = math.tanh %25 : vector<8x64xf32>
    %cst_12 = arith.constant dense<0.000000e+00> : vector<8x64xf32>
    %27 = tpu.matmul %26, %0, %cst_12 {dimension_numbers = #tpu.dot_dimension_numbers<[1], [0], [0], [1], [0, 0, 1, 1], [], []>} : vector<8x64xf32>, vector<64x64xf32>, vector<8x64xf32> -> vector<8x64xf32>
    %28 = vector.extract_strided_slice %7 {offsets = [32, 0], sizes = [8, 64], strides = [1, 1]} : vector<72x64xf32> to vector<8x64xf32>
    %29 = arith.addf %27, %28 : vector<8x64xf32>
    %30 = math.tanh %29 : vector<8x64xf32>
    %cst_13 = arith.constant dense<0.000000e+00> : vector<8x64xf32>
    %31 = tpu.matmul %30, %0, %cst_13 {dimension_numbers = #tpu.dot_dimension_numbers<[1], [0], [0], [1], [0, 0, 1, 1], [], []>} : vector<8x64xf32>, vector<64x64xf32>, vector<8x64xf32> -> vector<8x64xf32>
    %32 = vector.extract_strided_slice %7 {offsets = [40, 0], sizes = [8, 64], strides = [1, 1]} : vector<72x64xf32> to vector<8x64xf32>
    %33 = arith.addf %31, %32 : vector<8x64xf32>
    %34 = math.tanh %33 : vector<8x64xf32>
    %cst_14 = arith.constant dense<0.000000e+00> : vector<8x64xf32>
    %35 = tpu.matmul %34, %0, %cst_14 {dimension_numbers = #tpu.dot_dimension_numbers<[1], [0], [0], [1], [0, 0, 1, 1], [], []>} : vector<8x64xf32>, vector<64x64xf32>, vector<8x64xf32> -> vector<8x64xf32>
    %36 = vector.extract_strided_slice %7 {offsets = [48, 0], sizes = [8, 64], strides = [1, 1]} : vector<72x64xf32> to vector<8x64xf32>
    %37 = arith.addf %35, %36 : vector<8x64xf32>
    %38 = math.tanh %37 : vector<8x64xf32>
    %cst_15 = arith.constant dense<0.000000e+00> : vector<8x64xf32>
    %39 = tpu.matmul %38, %0, %cst_15 {dimension_numbers = #tpu.dot_dimension_numbers<[1], [0], [0], [1], [0, 0, 1, 1], [], []>} : vector<8x64xf32>, vector<64x64xf32>, vector<8x64xf32> -> vector<8x64xf32>
    %40 = vector.extract_strided_slice %7 {offsets = [56, 0], sizes = [8, 64], strides = [1, 1]} : vector<72x64xf32> to vector<8x64xf32>
    %41 = arith.addf %39, %40 : vector<8x64xf32>
    %42 = math.tanh %41 : vector<8x64xf32>
    %cst_16 = arith.constant dense<0.000000e+00> : vector<8x64xf32>
    %43 = tpu.matmul %42, %0, %cst_16 {dimension_numbers = #tpu.dot_dimension_numbers<[1], [0], [0], [1], [0, 0, 1, 1], [], []>} : vector<8x64xf32>, vector<64x64xf32>, vector<8x64xf32> -> vector<8x64xf32>
    %44 = vector.extract_strided_slice %7 {offsets = [64, 0], sizes = [8, 64], strides = [1, 1]} : vector<72x64xf32> to vector<8x64xf32>
    %45 = arith.addf %43, %44 : vector<8x64xf32>
    %46 = math.tanh %45 : vector<8x64xf32>
    %c0_17 = arith.constant 0 : index
    %c0_18 = arith.constant 0 : index
    %47 = vector.load %arg5[%c0_17, %c0_18] : memref<1x64xf32, #tpu.memory_space<vmem>>, vector<1x64xf32>
    %48 = vector.broadcast %47 : vector<1x64xf32> to vector<8x64xf32>
    %49 = arith.mulf %46, %48 : vector<8x64xf32>
    %cst_19 = arith.constant dense<0.000000e+00> : vector<8xf32>
    %50 = vector.multi_reduction <add>, %49, %cst_19 [1] : vector<8x64xf32> to vector<8xf32>
    %51 = vector.shape_cast %50 : vector<8xf32> to vector<8x1xf32>
    %c0_20 = arith.constant 0 : index
    %c0_21 = arith.constant 0 : index
    %52 = vector.load %arg6[%c0_20, %c0_21] : memref<1x1xf32, #tpu.memory_space<vmem>>, vector<1x1xf32>
    %53 = vector.broadcast %52 : vector<1x1xf32> to vector<8x1xf32>
    %54 = arith.addf %51, %53 : vector<8x1xf32>
    %c0_22 = arith.constant 0 : index
    %c0_23 = arith.constant 0 : index
    %55 = vector.load %arg7[%c0_22, %c0_23] : memref<8x1xf32, #tpu.memory_space<vmem>>, vector<8x1xf32>
    tpu.vector_store %arg7[%c0_22, %c0_23], %54 {strides = array<i32>} : memref<8x1xf32, #tpu.memory_space<vmem>>, vector<8x1xf32>,
    return
  }
  func.func @transform_0(%arg0: i32) -> (i32, i32, i32) {
    %c0_i32 = arith.constant 0 : i32
    %c0_i32_0 = arith.constant 0 : i32
    %c0_i32_1 = arith.constant 0 : i32
    return %c0_i32, %arg0, %c0_i32_0 : i32, i32, i32
  }
  func.func @transform_1(%arg0: i32) -> (i32, i32) {
    %c0_i32 = arith.constant 0 : i32
    %c0_i32_0 = arith.constant 0 : i32
    %c0_i32_1 = arith.constant 0 : i32
    return %c0_i32, %c0_i32_0 : i32, i32
  }
  func.func @transform_2(%arg0: i32) -> (i32, i32) {
    %c0_i32 = arith.constant 0 : i32
    %c0_i32_0 = arith.constant 0 : i32
    %c0_i32_1 = arith.constant 0 : i32
    return %c0_i32, %c0_i32_0 : i32, i32
  }
  func.func @transform_3(%arg0: i32) -> (i32, i32) {
    %c0_i32 = arith.constant 0 : i32
    %c0_i32_0 = arith.constant 0 : i32
    %c0_i32_1 = arith.constant 0 : i32
    return %c0_i32, %c0_i32_0 : i32, i32
  }
  func.func @transform_4(%arg0: i32) -> (i32, i32) {
    %c0_i32 = arith.constant 0 : i32
    %c0_i32_0 = arith.constant 0 : i32
    %c0_i32_1 = arith.constant 0 : i32
    return %c0_i32, %c0_i32_0 : i32, i32
  }
  func.func @transform_5(%arg0: i32) -> (i32, i32) {
    %c0_i32 = arith.constant 0 : i32
    %c0_i32_0 = arith.constant 0 : i32
    %c0_i32_1 = arith.constant 0 : i32
    return %c0_i32, %c0_i32_0 : i32, i32
  }
  func.func @transform_6(%arg0: i32) -> (i32, i32) {
    %c0_i32 = arith.constant 0 : i32
    %c0_i32_0 = arith.constant 0 : i32
    return %arg0, %c0_i32 : i32, i32
  }
}

</mosaic_0001>

<llo_original>
// kernel: cmapss_rnn_forward.1
$region0: #{cmapss_rnn_forward.1}
  #allocation0 [shape = 'u32[]', space=smem, size = 0x4, offset = 0x4, fixed_abs, tag = 'smem constant byte address 0x4 - core index']
  #allocation1 [shape = 'u32[144,128]{1,0:T(1,128)}', space=vmem, size = 0x12000, scoped, tag = 'internal scratch']
  #allocation2 [shape = 'f32[1,1]{1,0:T(1,128)S(1)}', space=vmem, size = 0x200, scoped, tag = 'scoped memory for cmapss_rnn_forward.1']
  %s0 = inlined_call_operand.vmem [shape: f32[9,8,16], index: 0, kind: input, shape index: {}]
  %s1 = inlined_call_operand.vmem [shape: f32[16,64], index: 1, kind: input, shape index: {}]
  %s2 = inlined_call_operand.vmem [shape: f32[1,64], index: 2, kind: input, shape index: {}]
  %s3 = inlined_call_operand.vmem [shape: f32[64,64], index: 3, kind: input, shape index: {}]
  %s4 = inlined_call_operand.vmem [shape: f32[1,64], index: 4, kind: input, shape index: {}]
  %s5 = inlined_call_operand.<no memory space> [shape: f32[1,1], index: 5, kind: input, shape index: {}]
  %s6 = inlined_call_operand.vmem [shape: f32[8,1], index: 6, kind: output, shape index: {}]
  %s7 = sld [smem:[#allocation0]]
  $region34: #{cmapss_rnn_forward.1} parent=0
    _
  %s9 = ssub.s32 1, %s7
  %s10 = scalar_select 0, %s9, %s7
  %v11 = vstv %s5
  %12 = vst [vmem:[#allocation2] sm:$0x1] %v11
  // Predicated region
  $region2: #{cmapss_rnn_forward.1} parent=0 // pred_check
    _
  $region3: #{cmapss_rnn_forward.1} parent=0 // pred_check_branch
    %14 = sbr.rel (0) target = $region5
  $region4: #{cmapss_rnn_forward.1} parent=0 // pred_region
    _
  $region5: #{cmapss_rnn_forward.1} parent=0 // pred_fallthru
    _
  // Predicated region
  $region6: #{cmapss_rnn_forward.1} parent=0 // pred_check
    _
  $region7: #{cmapss_rnn_forward.1} parent=0 // pred_check_branch
    %16 = sbr.rel (0) target = $region9
  $region8: #{cmapss_rnn_forward.1} parent=0 // pred_region
    _
  $region9: #{cmapss_rnn_forward.1} parent=0 // pred_fallthru
    _
  // Predicated region
  $region10: #{cmapss_rnn_forward.1} parent=0 // pred_check
    _
  $region11: #{cmapss_rnn_forward.1} parent=0 // pred_check_branch
    %18 = sbr.rel (0) target = $region13
  $region12: #{cmapss_rnn_forward.1} parent=0 // pred_region
    _
  $region13: #{cmapss_rnn_forward.1} parent=0 // pred_fallthru
    _
  // Predicated region
  $region14: #{cmapss_rnn_forward.1} parent=0 // pred_check
    _
  $region15: #{cmapss_rnn_forward.1} parent=0 // pred_check_branch
    %20 = sbr.rel (0) target = $region17
  $region16: #{cmapss_rnn_forward.1} parent=0 // pred_region
    _
  $region17: #{cmapss_rnn_forward.1} parent=0 // pred_fallthru
    _
  // Predicated region
  $region18: #{cmapss_rnn_forward.1} parent=0 // pred_check
    _
  $region19: #{cmapss_rnn_forward.1} parent=0 // pred_check_branch
    %22 = sbr.rel (0) target = $region21
  $region20: #{cmapss_rnn_forward.1} parent=0 // pred_region
    _
  $region21: #{cmapss_rnn_forward.1} parent=0 // pred_fallthru
    _
  // Predicated region
  $region22: #{cmapss_rnn_forward.1} parent=0 // pred_check
    _
  $region23: #{cmapss_rnn_forward.1} parent=0 // pred_check_branch
    %24 = sbr.rel (0) target = $region25
  $region24: #{cmapss_rnn_forward.1} parent=0 // pred_region
    _
  $region25: #{cmapss_rnn_forward.1} parent=0 // pred_fallthru
    _
  %v25 = vld [vmem:[%s3] sm:$0xff]
  %v26 = vld [vmem:[%s3 + $0x8] sm:$0xff]
  %v27 = vld [vmem:[%s3 + $0x10] sm:$0xff]
  %v28 = vld [vmem:[%s3 + $0x18] sm:$0xff]
  %v29 = vld [vmem:[%s3 + $0x20] sm:$0xff]
  %v30 = vld [vmem:[%s3 + $0x28] sm:$0xff]
  %v31 = vld [vmem:[%s3 + $0x30] sm:$0xff]
  %v32 = vld [vmem:[%s3 + $0x38] sm:$0xff]
  %v33 = vld [vmem:[%s0] sm:$0xff]
  %v34 = vld [vmem:[%s0 + $0x8] sm:$0xff]
  %v35 = vld [vmem:[%s0 + $0x10] sm:$0xff]
  %v36 = vld [vmem:[%s0 + $0x18] sm:$0xff]
  %v37 = vld [vmem:[%s0 + $0x20] sm:$0xff]
  %v38 = vld [vmem:[%s0 + $0x28] sm:$0xff]
  %v39 = vld [vmem:[%s0 + $0x30] sm:$0xff]
  %v40 = vld [vmem:[%s0 + $0x38] sm:$0xff]
  %v41 = vld [vmem:[%s0 + $0x40] sm:$0xff]
  %v42 = vld [vmem:[%s1] sm:$0xff]
  %v43 = vld [vmem:[%s1 + $0x8] sm:$0xff]
  %v44 = vld [vmem:[%s2] sm:$0x1]
  %v46 = vlaneseq
  %v47 = vshrl.u32 %v46, 7
  %v48 = vsub.s32 0, %v47
  %v49 = vrot.slane %v44, %v48
  %vm51 = vcmask 130048
  %v53 = vsel %vm51, %v33, 0
  %v56 = vsel %vm51, %v34, 0
  %v59 = vsel %vm51, %v35, 0
  %v62 = vsel %vm51, %v36, 0
  %v65 = vsel %vm51, %v37, 0
  %v68 = vsel %vm51, %v38, 0
  %v71 = vsel %vm51, %v39, 0
  %v74 = vsel %vm51, %v40, 0
  %v77 = vsel %vm51, %v41, 0
  %79 = vmatprep.subr.mxu0 0.0
  %80 = vmatpush1.msra.mxu0 0.0
  %81 = vmatprep.subr.mxu0 0.0
  %82 = vmatpush1.msra.mxu0 0.0
  %83 = vmatprep.subr.mxu0 0.0
  %84 = vmatpush1.msra.mxu0 0.0
  %85 = vmatprep.subr.mxu0 0.0
  %86 = vmatpush1.msra.mxu0 0.0
  %87 = vmatprep.subr.mxu0 0.0
  %88 = vmatpush1.msra.mxu0 0.0
  %89 = vmatprep.subr.mxu0 0.0
  %90 = vmatpush1.msra.mxu0 0.0
  %91 = vmatprep.subr.mxu0 0.0
  %92 = vmatpush1.msra.mxu0 0.0
  %93 = vmatprep.subr.mxu0 0.0
  %94 = vmatpush1.msra.mxu0 0.0
  %95 = vmatprep.subr.mxu0 0.0
  %96 = vmatpush1.msra.mxu0 0.0
  %97 = vmatprep.subr.mxu0 0.0
  %98 = vmatpush1.msra.mxu0 0.0
  %99 = vmatprep.subr.mxu0 0.0
  %100 = vmatpush1.msra.mxu0 0.0
  %101 = vmatprep.subr.mxu0 0.0
  %102 = vmatpush1.msra.mxu0 0.0
  %103 = vmatprep.subr.mxu0 0.0
  %104 = vmatpush1.msra.mxu0 0.0
  %105 = vmatprep.subr.mxu0 0.0
  %106 = vmatpush1.msra.mxu0 0.0
  %107 = vmatprep.subr.mxu0 0.0
  %108 = vmatpush1.msra.mxu0 %v43
  %109 = vmatprep.subr.mxu0 0.0
  %110 = vmatpush1.msra.mxu0 %v42
  %111 = vmatprep.subr.mxu0 0.0
  %112 = vmatpush2.msra.mxu0 0.0
  %113 = vmatprep.subr.mxu0 0.0
  %114 = vmatpush2.msra.mxu0 0.0
  %115 = vmatprep.subr.mxu0 0.0
  %116 = vmatpush2.msra.mxu0 0.0
  %117 = vmatprep.subr.mxu0 0.0
  %118 = vmatpush2.msra.mxu0 0.0
  %119 = vmatprep.subr.mxu0 0.0
  %120 = vmatpush2.msra.mxu0 0.0
  %121 = vmatprep.subr.mxu0 0.0
  %122 = vmatpush2.msra.mxu0 0.0
  %123 = vmatprep.subr.mxu0 0.0
  %124 = vmatpush2.msra.mxu0 0.0
  %125 = vmatprep.subr.mxu0 0.0
  %126 = vmatpush2.msra.mxu0 0.0
  %127 = vmatprep.subr.mxu0 0.0
  %128 = vmatpush2.msra.mxu0 0.0
  %129 = vmatprep.subr.mxu0 0.0
  %130 = vmatpush2.msra.mxu0 0.0
  %131 = vmatprep.subr.mxu0 0.0
  %132 = vmatpush2.msra.mxu0 0.0
  %133 = vmatprep.subr.mxu0 0.0
  %134 = vmatpush2.msra.mxu0 0.0
  %135 = vmatprep.subr.mxu0 0.0
  %136 = vmatpush2.msra.mxu0 0.0
  %137 = vmatprep.subr.mxu0 0.0
  %138 = vmatpush2.msra.mxu0 0.0
  %139 = vmatprep.subr.mxu0 0.0
  %140 = vmatpush2.msra.mxu0 0.0
  %141 = vmatprep.subr.mxu0 0.0
  %142 = vmatpush2.msra.mxu0 0.0
  %143 = vmatprep.mubr.f32.mxu0 0.0
  %144 = vmatmul.mubr.f32.gmra.mxu0 %v53
  %v145 = vpop.f32.mrf.mxu0
  %v146 = vadd.f32 %v49, %v145
  %v147 = vpop.f32.mrf.mxu0
  %148 = vmatprep.mubr.f32.mxu0 0.0
  %149 = vmatmul.mubr.f32.gmra.mxu0 %v56
  %v150 = vpop.f32.mrf.mxu0
  %v151 = vadd.f32 %v49, %v150
  %v152 = vpop.f32.mrf.mxu0
  %153 = vmatprep.mubr.f32.mxu0 0.0
  %154 = vmatmul.mubr.f32.gmra.mxu0 %v59
  %v155 = vpop.f32.mrf.mxu0
  %v156 = vadd.f32 %v49, %v155
  %v157 = vpop.f32.mrf.mxu0
  %158 = vmatprep.mubr.f32.mxu0 0.0
  %159 = vmatmul.mubr.f32.gmra.mxu0 %v62
  %v160 = vpop.f32.mrf.mxu0
  %v161 = vadd.f32 %v49, %v160
  %v162 = vpop.f32.mrf.mxu0
  %163 = vmatprep.mubr.f32.mxu0 0.0
  %164 = vmatmul.mubr.f32.gmra.mxu0 %v65
  %v165 = vpop.f32.mrf.mxu0
  %v166 = vadd.f32 %v49, %v165
  %v167 = vpop.f32.mrf.mxu0
  %168 = vmatprep.mubr.f32.mxu0 0.0
  %169 = vmatmul.mubr.f32.gmra.mxu0 %v68
  %v170 = vpop.f32.mrf.mxu0
  %v171 = vadd.f32 %v49, %v170
  %v172 = vpop.f32.mrf.mxu0
  %173 = vmatprep.mubr.f32.mxu0 0.0
  %174 = vmatmul.mubr.f32.gmra.mxu0 %v71
  %v175 = vpop.f32.mrf.mxu0
  %v176 = vadd.f32 %v49, %v175
  %v177 = vpop.f32.mrf.mxu0
  %178 = vmatprep.mubr.f32.mxu0 0.0
  %179 = vmatmul.mubr.f32.gmra.mxu0 %v74
  %v180 = vpop.f32.mrf.mxu0
  %v181 = vadd.f32 %v49, %v180
  %v182 = vpop.f32.mrf.mxu0
  %183 = vmatprep.mubr.f32.mxu0 0.0
  %184 = vmatmul.mubr.f32.gmra.mxu0 %v77
  %v185 = vpop.f32.mrf.mxu0
  %v186 = vadd.f32 %v49, %v185
  %v187 = vpop.f32.mrf.mxu0
  %188 = vdwg.mxu0
  %v189 = vlaneseq
  %v190 = vand.u32 %v189, 127
  %vm191 = vcmp.lt.s32.totalorder %v190, 32
  %v192 = vtanh.pop %v146
  %v193 = vsel %vm191, %v192, 0.0
  %vm194 = vcmask 523264
  %v196 = vsel %vm194, %v193, 0
  %198 = vmatprep.subr.mxu0 0.0
  %199 = vmatpush1.msra.mxu0 0.0
  %200 = vmatprep.subr.mxu0 0.0
  %201 = vmatpush1.msra.mxu0 0.0
  %202 = vmatprep.subr.mxu0 0.0
  %203 = vmatpush1.msra.mxu0 0.0
  %204 = vmatprep.subr.mxu0 0.0
  %205 = vmatpush1.msra.mxu0 0.0
  %206 = vmatprep.subr.mxu0 0.0
  %207 = vmatpush1.msra.mxu0 0.0
  %208 = vmatprep.subr.mxu0 0.0
  %209 = vmatpush1.msra.mxu0 0.0
  %210 = vmatprep.subr.mxu0 0.0
  %211 = vmatpush1.msra.mxu0 0.0
  %212 = vmatprep.subr.mxu0 0.0
  %213 = vmatpush1.msra.mxu0 0.0
  %214 = vmatprep.subr.mxu0 0.0
  %215 = vmatpush1.msra.mxu0 %v32
  %216 = vmatprep.subr.mxu0 0.0
  %217 = vmatpush1.msra.mxu0 %v31
  %218 = vmatprep.subr.mxu0 0.0
  %219 = vmatpush1.msra.mxu0 %v30
  %220 = vmatprep.subr.mxu0 0.0
  %221 = vmatpush1.msra.mxu0 %v29
  %222 = vmatprep.subr.mxu0 0.0
  %223 = vmatpush1.msra.mxu0 %v28
  %224 = vmatprep.subr.mxu0 0.0
  %225 = vmatpush1.msra.mxu0 %v27
  %226 = vmatprep.subr.mxu0 0.0
  %227 = vmatpush1.msra.mxu0 %v26
  %228 = vmatprep.subr.mxu0 0.0
  %229 = vmatpush1.msra.mxu0 %v25
  %230 = vmatprep.subr.mxu0 0.0
  %231 = vmatpush2.msra.mxu0 0.0
  %232 = vmatprep.subr.mxu0 0.0
  %233 = vmatpush2.msra.mxu0 0.0
  %234 = vmatprep.subr.mxu0 0.0
  %235 = vmatpush2.msra.mxu0 0.0
  %236 = vmatprep.subr.mxu0 0.0
  %237 = vmatpush2.msra.mxu0 0.0
  %238 = vmatprep.subr.mxu0 0.0
  %239 = vmatpush2.msra.mxu0 0.0
  %240 = vmatprep.subr.mxu0 0.0
  %241 = vmatpush2.msra.mxu0 0.0
  %242 = vmatprep.subr.mxu0 0.0
  %243 = vmatpush2.msra.mxu0 0.0
  %244 = vmatprep.subr.mxu0 0.0
  %245 = vmatpush2.msra.mxu0 0.0
  %246 = vmatprep.subr.mxu0 0.0
  %247 = vmatpush2.msra.mxu0 0.0
  %248 = vmatprep.subr.mxu0 0.0
  %249 = vmatpush2.msra.mxu0 0.0
  %250 = vmatprep.subr.mxu0 0.0
  %251 = vmatpush2.msra.mxu0 0.0
  %252 = vmatprep.subr.mxu0 0.0
  %253 = vmatpush2.msra.mxu0 0.0
  %254 = vmatprep.subr.mxu0 0.0
  %255 = vmatpush2.msra.mxu0 0.0
  %256 = vmatprep.subr.mxu0 0.0
  %257 = vmatpush2.msra.mxu0 0.0
  %258 = vmatprep.subr.mxu0 0.0
  %259 = vmatpush2.msra.mxu0 0.0
  %260 = vmatprep.subr.mxu0 0.0
  %261 = vmatpush2.msra.mxu0 0.0
  %262 = vmatprep.mubr.f32.mxu0 0.0
  %263 = vmatmul.mubr.f32.gmra.mxu0 %v196
  %v264 = vpop.f32.mrf.mxu0
  %v265 = vadd.f32 %v151, %v264
  %v266 = vpop.f32.mrf.mxu0
  %267 = vdwg.mxu0
  %v268 = vtanh.pop %v265
  %v270 = vsel %vm194, %v268, 0
  %272 = vmatprep.subr.mxu0 0.0
  %273 = vmatpush1.msra.mxu0 0.0
  %274 = vmatprep.subr.mxu0 0.0
  %275 = vmatpush1.msra.mxu0 0.0
  %276 = vmatprep.subr.mxu0 0.0
  %277 = vmatpush1.msra.mxu0 0.0
  %278 = vmatprep.subr.mxu0 0.0
  %279 = vmatpush1.msra.mxu0 0.0
  %280 = vmatprep.subr.mxu0 0.0
  %281 = vmatpush1.msra.mxu0 0.0
  %282 = vmatprep.subr.mxu0 0.0
  %283 = vmatpush1.msra.mxu0 0.0
  %284 = vmatprep.subr.mxu0 0.0
  %285 = vmatpush1.msra.mxu0 0.0
  %286 = vmatprep.subr.mxu0 0.0
  %287 = vmatpush1.msra.mxu0 0.0
  %288 = vmatprep.subr.mxu0 0.0
  %289 = vmatpush1.msra.mxu0 %v32
  %290 = vmatprep.subr.mxu0 0.0
  %291 = vmatpush1.msra.mxu0 %v31
  %292 = vmatprep.subr.mxu0 0.0
  %293 = vmatpush1.msra.mxu0 %v30
  %294 = vmatprep.subr.mxu0 0.0
  %295 = vmatpush1.msra.mxu0 %v29
  %296 = vmatprep.subr.mxu0 0.0
  %297 = vmatpush1.msra.mxu0 %v28
  %298 = vmatprep.subr.mxu0 0.0
  %299 = vmatpush1.msra.mxu0 %v27
  %300 = vmatprep.subr.mxu0 0.0
  %301 = vmatpush1.msra.mxu0 %v26
  %302 = vmatprep.subr.mxu0 0.0
  %303 = vmatpush1.msra.mxu0 %v25
  %304 = vmatprep.subr.mxu0 0.0
  %305 = vmatpush2.msra.mxu0 0.0
  %306 = vmatprep.subr.mxu0 0.0
  %307 = vmatpush2.msra.mxu0 0.0
  %308 = vmatprep.subr.mxu0 0.0
  %309 = vmatpush2.msra.mxu0 0.0
  %310 = vmatprep.subr.mxu0 0.0
  %311 = vmatpush2.msra.mxu0 0.0
  %312 = vmatprep.subr.mxu0 0.0
  %313 = vmatpush2.msra.mxu0 0.0
  %314 = vmatprep.subr.mxu0 0.0
  %315 = vmatpush2.msra.mxu0 0.0
  %316 = vmatprep.subr.mxu0 0.0
  %317 = vmatpush2.msra.mxu0 0.0
  %318 = vmatprep.subr.mxu0 0.0
  %319 = vmatpush2.msra.mxu0 0.0
  %320 = vmatprep.subr.mxu0 0.0
  %321 = vmatpush2.msra.mxu0 0.0
  %322 = vmatprep.subr.mxu0 0.0
  %323 = vmatpush2.msra.mxu0 0.0
  %324 = vmatprep.subr.mxu0 0.0
  %325 = vmatpush2.msra.mxu0 0.0
  %326 = vmatprep.subr.mxu0 0.0
  %327 = vmatpush2.msra.mxu0 0.0
  %328 = vmatprep.subr.mxu0 0.0
  %329 = vmatpush2.msra.mxu0 0.0
  %330 = vmatprep.subr.mxu0 0.0
  %331 = vmatpush2.msra.mxu0 0.0
  %332 = vmatprep.subr.mxu0 0.0
  %333 = vmatpush2.msra.mxu0 0.0
  %334 = vmatprep.subr.mxu0 0.0
  %335 = vmatpush2.msra.mxu0 0.0
  %336 = vmatprep.mubr.f32.mxu0 0.0
  %337 = vmatmul.mubr.f32.gmra.mxu0 %v270
  %v338 = vpop.f32.mrf.mxu0
  %v339 = vadd.f32 %v156, %v338
  %v340 = vpop.f32.mrf.mxu0
  %341 = vdwg.mxu0
  %v342 = vtanh.pop %v339
  %v344 = vsel %vm194, %v342, 0
  %346 = vmatprep.subr.mxu0 0.0
  %347 = vmatpush1.msra.mxu0 0.0
  %348 = vmatprep.subr.mxu0 0.0
  %349 = vmatpush1.msra.mxu0 0.0
  %350 = vmatprep.subr.mxu0 0.0
  %351 = vmatpush1.msra.mxu0 0.0
  %352 = vmatprep.subr.mxu0 0.0
  %353 = vmatpush1.msra.mxu0 0.0
  %354 = vmatprep.subr.mxu0 0.0
  %355 = vmatpush1.msra.mxu0 0.0
  %356 = vmatprep.subr.mxu0 0.0
  %357 = vmatpush1.msra.mxu0 0.0
  %358 = vmatprep.subr.mxu0 0.0
  %359 = vmatpush1.msra.mxu0 0.0
  %360 = vmatprep.subr.mxu0 0.0
  %361 = vmatpush1.msra.mxu0 0.0
  %362 = vmatprep.subr.mxu0 0.0
  %363 = vmatpush1.msra.mxu0 %v32
  %364 = vmatprep.subr.mxu0 0.0
  %365 = vmatpush1.msra.mxu0 %v31
  %366 = vmatprep.subr.mxu0 0.0
  %367 = vmatpush1.msra.mxu0 %v30
  %368 = vmatprep.subr.mxu0 0.0
  %369 = vmatpush1.msra.mxu0 %v29
  %370 = vmatprep.subr.mxu0 0.0
  %371 = vmatpush1.msra.mxu0 %v28
  %372 = vmatprep.subr.mxu0 0.0
  %373 = vmatpush1.msra.mxu0 %v27
  %374 = vmatprep.subr.mxu0 0.0
  %375 = vmatpush1.msra.mxu0 %v26
  %376 = vmatprep.subr.mxu0 0.0
  %377 = vmatpush1.msra.mxu0 %v25
  %378 = vmatprep.subr.mxu0 0.0
  %379 = vmatpush2.msra.mxu0 0.0
  %380 = vmatprep.subr.mxu0 0.0
  %381 = vmatpush2.msra.mxu0 0.0
  %382 = vmatprep.subr.mxu0 0.0
  %383 = vmatpush2.msra.mxu0 0.0
  %384 = vmatprep.subr.mxu0 0.0
  %385 = vmatpush2.msra.mxu0 0.0
  %386 = vmatprep.subr.mxu0 0.0
  %387 = vmatpush2.msra.mxu0 0.0
  %388 = vmatprep.subr.mxu0 0.0
  %389 = vmatpush2.msra.mxu0 0.0
  %390 = vmatprep.subr.mxu0 0.0
  %391 = vmatpush2.msra.mxu0 0.0
  %392 = vmatprep.subr.mxu0 0.0
  %393 = vmatpush2.msra.mxu0 0.0
  %394 = vmatprep.subr.mxu0 0.0
  %395 = vmatpush2.msra.mxu0 0.0
  %396 = vmatprep.subr.mxu0 0.0
  %397 = vmatpush2.msra.mxu0 0.0
  %398 = vmatprep.subr.mxu0 0.0
  %399 = vmatpush2.msra.mxu0 0.0
  %400 = vmatprep.subr.mxu0 0.0
  %401 = vmatpush2.msra.mxu0 0.0
  %402 = vmatprep.subr.mxu0 0.0
  %403 = vmatpush2.msra.mxu0 0.0
  %404 = vmatprep.subr.mxu0 0.0
  %405 = vmatpush2.msra.mxu0 0.0
  %406 = vmatprep.subr.mxu0 0.0
  %407 = vmatpush2.msra.mxu0 0.0
  %408 = vmatprep.subr.mxu0 0.0
  %409 = vmatpush2.msra.mxu0 0.0
  %410 = vmatprep.mubr.f32.mxu0 0.0
  %411 = vmatmul.mubr.f32.gmra.mxu0 %v344
  %v412 = vpop.f32.mrf.mxu0
  %v413 = vadd.f32 %v161, %v412
  %v414 = vpop.f32.mrf.mxu0
  %415 = vdwg.mxu0
  %v416 = vtanh.pop %v413
  %v418 = vsel %vm194, %v416, 0
  %420 = vmatprep.subr.mxu0 0.0
  %421 = vmatpush1.msra.mxu0 0.0
  %422 = vmatprep.subr.mxu0 0.0
  %423 = vmatpush1.msra.mxu0 0.0
  %424 = vmatprep.subr.mxu0 0.0
  %425 = vmatpush1.msra.mxu0 0.0
  %426 = vmatprep.subr.mxu0 0.0
  %427 = vmatpush1.msra.mxu0 0.0
  %428 = vmatprep.subr.mxu0 0.0
  %429 = vmatpush1.msra.mxu0 0.0
  %430 = vmatprep.subr.mxu0 0.0
  %431 = vmatpush1.msra.mxu0 0.0
  %432 = vmatprep.subr.mxu0 0.0
  %433 = vmatpush1.msra.mxu0 0.0
  %434 = vmatprep.subr.mxu0 0.0
  %435 = vmatpush1.msra.mxu0 0.0
  %436 = vmatprep.subr.mxu0 0.0
  %437 = vmatpush1.msra.mxu0 %v32
  %438 = vmatprep.subr.mxu0 0.0
  %439 = vmatpush1.msra.mxu0 %v31
  %440 = vmatprep.subr.mxu0 0.0
  %441 = vmatpush1.msra.mxu0 %v30
  %442 = vmatprep.subr.mxu0 0.0
  %443 = vmatpush1.msra.mxu0 %v29
  %444 = vmatprep.subr.mxu0 0.0
  %445 = vmatpush1.msra.mxu0 %v28
  %446 = vmatprep.subr.mxu0 0.0
  %447 = vmatpush1.msra.mxu0 %v27
  %448 = vmatprep.subr.mxu0 0.0
  %449 = vmatpush1.msra.mxu0 %v26
  %450 = vmatprep.subr.mxu0 0.0
  %451 = vmatpush1.msra.mxu0 %v25
  %452 = vmatprep.subr.mxu0 0.0
  %453 = vmatpush2.msra.mxu0 0.0
  %454 = vmatprep.subr.mxu0 0.0
  %455 = vmatpush2.msra.mxu0 0.0
  %456 = vmatprep.subr.mxu0 0.0
  %457 = vmatpush2.msra.mxu0 0.0
  %458 = vmatprep.subr.mxu0 0.0
  %459 = vmatpush2.msra.mxu0 0.0
  %460 = vmatprep.subr.mxu0 0.0
  %461 = vmatpush2.msra.mxu0 0.0
  %462 = vmatprep.subr.mxu0 0.0
  %463 = vmatpush2.msra.mxu0 0.0
  %464 = vmatprep.subr.mxu0 0.0
  %465 = vmatpush2.msra.mxu0 0.0
  %466 = vmatprep.subr.mxu0 0.0
  %467 = vmatpush2.msra.mxu0 0.0
  %468 = vmatprep.subr.mxu0 0.0
  %469 = vmatpush2.msra.mxu0 0.0
  %470 = vmatprep.subr.mxu0 0.0
  %471 = vmatpush2.msra.mxu0 0.0
  %472 = vmatprep.subr.mxu0 0.0
  %473 = vmatpush2.msra.mxu0 0.0
  %474 = vmatprep.subr.mxu0 0.0
  %475 = vmatpush2.msra.mxu0 0.0
  %476 = vmatprep.subr.mxu0 0.0
  %477 = vmatpush2.msra.mxu0 0.0
  %478 = vmatprep.subr.mxu0 0.0
  %479 = vmatpush2.msra.mxu0 0.0
  %480 = vmatprep.subr.mxu0 0.0
  %481 = vmatpush2.msra.mxu0 0.0
  %482 = vmatprep.subr.mxu0 0.0
  %483 = vmatpush2.msra.mxu0 0.0
  %484 = vmatprep.mubr.f32.mxu0 0.0
  %485 = vmatmul.mubr.f32.gmra.mxu0 %v418
  %v486 = vpop.f32.mrf.mxu0
  %v487 = vadd.f32 %v166, %v486
  %v488 = vpop.f32.mrf.mxu0
  %489 = vdwg.mxu0
  %v490 = vtanh.pop %v487
  %v492 = vsel %vm194, %v490, 0
  %494 = vmatprep.subr.mxu0 0.0
  %495 = vmatpush1.msra.mxu0 0.0
  %496 = vmatprep.subr.mxu0 0.0
  %497 = vmatpush1.msra.mxu0 0.0
  %498 = vmatprep.subr.mxu0 0.0
  %499 = vmatpush1.msra.mxu0 0.0
  %500 = vmatprep.subr.mxu0 0.0
  %501 = vmatpush1.msra.mxu0 0.0
  %502 = vmatprep.subr.mxu0 0.0
  %503 = vmatpush1.msra.mxu0 0.0
  %504 = vmatprep.subr.mxu0 0.0
  %505 = vmatpush1.msra.mxu0 0.0
  %506 = vmatprep.subr.mxu0 0.0
  %507 = vmatpush1.msra.mxu0 0.0
  %508 = vmatprep.subr.mxu0 0.0
  %509 = vmatpush1.msra.mxu0 0.0
  %510 = vmatprep.subr.mxu0 0.0
  %511 = vmatpush1.msra.mxu0 %v32
  %512 = vmatprep.subr.mxu0 0.0
  %513 = vmatpush1.msra.mxu0 %v31
  %514 = vmatprep.subr.mxu0 0.0
  %515 = vmatpush1.msra.mxu0 %v30
  %516 = vmatprep.subr.mxu0 0.0
  %517 = vmatpush1.msra.mxu0 %v29
  %518 = vmatprep.subr.mxu0 0.0
  %519 = vmatpush1.msra.mxu0 %v28
  %520 = vmatprep.subr.mxu0 0.0
  %521 = vmatpush1.msra.mxu0 %v27
  %522 = vmatprep.subr.mxu0 0.0
  %523 = vmatpush1.msra.mxu0 %v26
  %524 = vmatprep.subr.mxu0 0.0
  %525 = vmatpush1.msra.mxu0 %v25
  %526 = vmatprep.subr.mxu0 0.0
  %527 = vmatpush2.msra.mxu0 0.0
  %528 = vmatprep.subr.mxu0 0.0
  %529 = vmatpush2.msra.mxu0 0.0
  %530 = vmatprep.subr.mxu0 0.0
  %531 = vmatpush2.msra.mxu0 0.0
  %532 = vmatprep.subr.mxu0 0.0
  %533 = vmatpush2.msra.mxu0 0.0
  %534 = vmatprep.subr.mxu0 0.0
  %535 = vmatpush2.msra.mxu0 0.0
  %536 = vmatprep.subr.mxu0 0.0
  %537 = vmatpush2.msra.mxu0 0.0
  %538 = vmatprep.subr.mxu0 0.0
  %539 = vmatpush2.msra.mxu0 0.0
  %540 = vmatprep.subr.mxu0 0.0
  %541 = vmatpush2.msra.mxu0 0.0
  %542 = vmatprep.subr.mxu0 0.0
  %543 = vmatpush2.msra.mxu0 0.0
  %544 = vmatprep.subr.mxu0 0.0
  %545 = vmatpush2.msra.mxu0 0.0
  %546 = vmatprep.subr.mxu0 0.0
  %547 = vmatpush2.msra.mxu0 0.0
  %548 = vmatprep.subr.mxu0 0.0
  %549 = vmatpush2.msra.mxu0 0.0
  %550 = vmatprep.subr.mxu0 0.0
  %551 = vmatpush2.msra.mxu0 0.0
  %552 = vmatprep.subr.mxu0 0.0
  %553 = vmatpush2.msra.mxu0 0.0
  %554 = vmatprep.subr.mxu0 0.0
  %555 = vmatpush2.msra.mxu0 0.0
  %556 = vmatprep.subr.mxu0 0.0
  %557 = vmatpush2.msra.mxu0 0.0
  %558 = vmatprep.mubr.f32.mxu0 0.0
  %559 = vmatmul.mubr.f32.gmra.mxu0 %v492
  %v560 = vpop.f32.mrf.mxu0
  %v561 = vadd.f32 %v171, %v560
  %v562 = vpop.f32.mrf.mxu0
  %563 = vdwg.mxu0
  %v564 = vtanh.pop %v561
  %v566 = vsel %vm194, %v564, 0
  %568 = vmatprep.subr.mxu0 0.0
  %569 = vmatpush1.msra.mxu0 0.0
  %570 = vmatprep.subr.mxu0 0.0
  %571 = vmatpush1.msra.mxu0 0.0
  %572 = vmatprep.subr.mxu0 0.0
  %573 = vmatpush1.msra.mxu0 0.0
  %574 = vmatprep.subr.mxu0 0.0
  %575 = vmatpush1.msra.mxu0 0.0
  %576 = vmatprep.subr.mxu0 0.0
  %577 = vmatpush1.msra.mxu0 0.0
  %578 = vmatprep.subr.mxu0 0.0
  %579 = vmatpush1.msra.mxu0 0.0
  %580 = vmatprep.subr.mxu0 0.0
  %581 = vmatpush1.msra.mxu0 0.0
  %582 = vmatprep.subr.mxu0 0.0
  %583 = vmatpush1.msra.mxu0 0.0
  %584 = vmatprep.subr.mxu0 0.0
  %585 = vmatpush1.msra.mxu0 %v32
  %586 = vmatprep.subr.mxu0 0.0
  %587 = vmatpush1.msra.mxu0 %v31
  %588 = vmatprep.subr.mxu0 0.0
  %589 = vmatpush1.msra.mxu0 %v30
  %590 = vmatprep.subr.mxu0 0.0
  %591 = vmatpush1.msra.mxu0 %v29
  %592 = vmatprep.subr.mxu0 0.0
  %593 = vmatpush1.msra.mxu0 %v28
  %594 = vmatprep.subr.mxu0 0.0
  %595 = vmatpush1.msra.mxu0 %v27
  %596 = vmatprep.subr.mxu0 0.0
  %597 = vmatpush1.msra.mxu0 %v26
  %598 = vmatprep.subr.mxu0 0.0
  %599 = vmatpush1.msra.mxu0 %v25
  %600 = vmatprep.subr.mxu0 0.0
  %601 = vmatpush2.msra.mxu0 0.0
  %602 = vmatprep.subr.mxu0 0.0
  %603 = vmatpush2.msra.mxu0 0.0
  %604 = vmatprep.subr.mxu0 0.0
  %605 = vmatpush2.msra.mxu0 0.0
  %606 = vmatprep.subr.mxu0 0.0
  %607 = vmatpush2.msra.mxu0 0.0
  %608 = vmatprep.subr.mxu0 0.0
  %609 = vmatpush2.msra.mxu0 0.0
  %610 = vmatprep.subr.mxu0 0.0
  %611 = vmatpush2.msra.mxu0 0.0
  %612 = vmatprep.subr.mxu0 0.0
  %613 = vmatpush2.msra.mxu0 0.0
  %614 = vmatprep.subr.mxu0 0.0
  %615 = vmatpush2.msra.mxu0 0.0
  %616 = vmatprep.subr.mxu0 0.0
  %617 = vmatpush2.msra.mxu0 0.0
  %618 = vmatprep.subr.mxu0 0.0
  %619 = vmatpush2.msra.mxu0 0.0
  %620 = vmatprep.subr.mxu0 0.0
  %621 = vmatpush2.msra.mxu0 0.0
  %622 = vmatprep.subr.mxu0 0.0
  %623 = vmatpush2.msra.mxu0 0.0
  %624 = vmatprep.subr.mxu0 0.0
  %625 = vmatpush2.msra.mxu0 0.0
  %626 = vmatprep.subr.mxu0 0.0
  %627 = vmatpush2.msra.mxu0 0.0
  %628 = vmatprep.subr.mxu0 0.0
  %629 = vmatpush2.msra.mxu0 0.0
  %630 = vmatprep.subr.mxu0 0.0
  %631 = vmatpush2.msra.mxu0 0.0
  %632 = vmatprep.mubr.f32.mxu0 0.0
  %633 = vmatmul.mubr.f32.gmra.mxu0 %v566
  %v634 = vpop.f32.mrf.mxu0
  %v635 = vadd.f32 %v176, %v634
  %v636 = vpop.f32.mrf.mxu0
  %637 = vdwg.mxu0
  %v638 = vtanh.pop %v635
  %v640 = vsel %vm194, %v638, 0
  %642 = vmatprep.subr.mxu0 0.0
  %643 = vmatpush1.msra.mxu0 0.0
  %644 = vmatprep.subr.mxu0 0.0
  %645 = vmatpush1.msra.mxu0 0.0
  %646 = vmatprep.subr.mxu0 0.0
  %647 = vmatpush1.msra.mxu0 0.0
  %648 = vmatprep.subr.mxu0 0.0
  %649 = vmatpush1.msra.mxu0 0.0
  %650 = vmatprep.subr.mxu0 0.0
  %651 = vmatpush1.msra.mxu0 0.0
  %652 = vmatprep.subr.mxu0 0.0
  %653 = vmatpush1.msra.mxu0 0.0
  %654 = vmatprep.subr.mxu0 0.0
  %655 = vmatpush1.msra.mxu0 0.0
  %656 = vmatprep.subr.mxu0 0.0
  %657 = vmatpush1.msra.mxu0 0.0
  %658 = vmatprep.subr.mxu0 0.0
  %659 = vmatpush1.msra.mxu0 %v32
  %660 = vmatprep.subr.mxu0 0.0
  %661 = vmatpush1.msra.mxu0 %v31
  %662 = vmatprep.subr.mxu0 0.0
  %663 = vmatpush1.msra.mxu0 %v30
  %664 = vmatprep.subr.mxu0 0.0
  %665 = vmatpush1.msra.mxu0 %v29
  %666 = vmatprep.subr.mxu0 0.0
  %667 = vmatpush1.msra.mxu0 %v28
  %668 = vmatprep.subr.mxu0 0.0
  %669 = vmatpush1.msra.mxu0 %v27
  %670 = vmatprep.subr.mxu0 0.0
  %671 = vmatpush1.msra.mxu0 %v26
  %672 = vmatprep.subr.mxu0 0.0
  %673 = vmatpush1.msra.mxu0 %v25
  %674 = vmatprep.subr.mxu0 0.0
  %675 = vmatpush2.msra.mxu0 0.0
  %676 = vmatprep.subr.mxu0 0.0
  %677 = vmatpush2.msra.mxu0 0.0
  %678 = vmatprep.subr.mxu0 0.0
  %679 = vmatpush2.msra.mxu0 0.0
  %680 = vmatprep.subr.mxu0 0.0
  %681 = vmatpush2.msra.mxu0 0.0
  %682 = vmatprep.subr.mxu0 0.0
  %683 = vmatpush2.msra.mxu0 0.0
  %684 = vmatprep.subr.mxu0 0.0
  %685 = vmatpush2.msra.mxu0 0.0
  %686 = vmatprep.subr.mxu0 0.0
  %687 = vmatpush2.msra.mxu0 0.0
  %688 = vmatprep.subr.mxu0 0.0
  %689 = vmatpush2.msra.mxu0 0.0
  %690 = vmatprep.subr.mxu0 0.0
  %691 = vmatpush2.msra.mxu0 0.0
  %692 = vmatprep.subr.mxu0 0.0
  %693 = vmatpush2.msra.mxu0 0.0
  %694 = vmatprep.subr.mxu0 0.0
  %695 = vmatpush2.msra.mxu0 0.0
  %696 = vmatprep.subr.mxu0 0.0
  %697 = vmatpush2.msra.mxu0 0.0
  %698 = vmatprep.subr.mxu0 0.0
  %699 = vmatpush2.msra.mxu0 0.0
  %700 = vmatprep.subr.mxu0 0.0
  %701 = vmatpush2.msra.mxu0 0.0
  %702 = vmatprep.subr.mxu0 0.0
  %703 = vmatpush2.msra.mxu0 0.0
  %704 = vmatprep.subr.mxu0 0.0
  %705 = vmatpush2.msra.mxu0 0.0
  %706 = vmatprep.mubr.f32.mxu0 0.0
  %707 = vmatmul.mubr.f32.gmra.mxu0 %v640
  %v708 = vpop.f32.mrf.mxu0
  %v709 = vadd.f32 %v181, %v708
  %v710 = vpop.f32.mrf.mxu0
  %711 = vdwg.mxu0
  %v712 = vtanh.pop %v709
  %v714 = vsel %vm194, %v712, 0
  %716 = vmatprep.subr.mxu0 0.0
  %717 = vmatpush1.msra.mxu0 0.0
  %718 = vmatprep.subr.mxu0 0.0
  %719 = vmatpush1.msra.mxu0 0.0
  %720 = vmatprep.subr.mxu0 0.0
  %721 = vmatpush1.msra.mxu0 0.0
  %722 = vmatprep.subr.mxu0 0.0
  %723 = vmatpush1.msra.mxu0 0.0
  %724 = vmatprep.subr.mxu0 0.0
  %725 = vmatpush1.msra.mxu0 0.0
  %726 = vmatprep.subr.mxu0 0.0
  %727 = vmatpush1.msra.mxu0 0.0
  %728 = vmatprep.subr.mxu0 0.0
  %729 = vmatpush1.msra.mxu0 0.0
  %730 = vmatprep.subr.mxu0 0.0
  %731 = vmatpush1.msra.mxu0 0.0
  %732 = vmatprep.subr.mxu0 0.0
  %733 = vmatpush1.msra.mxu0 %v32
  %734 = vmatprep.subr.mxu0 0.0
  %735 = vmatpush1.msra.mxu0 %v31
  %736 = vmatprep.subr.mxu0 0.0
  %737 = vmatpush1.msra.mxu0 %v30
  %738 = vmatprep.subr.mxu0 0.0
  %739 = vmatpush1.msra.mxu0 %v29
  %740 = vmatprep.subr.mxu0 0.0
  %741 = vmatpush1.msra.mxu0 %v28
  %742 = vmatprep.subr.mxu0 0.0
  %743 = vmatpush1.msra.mxu0 %v27
  %744 = vmatprep.subr.mxu0 0.0
  %745 = vmatpush1.msra.mxu0 %v26
  %746 = vmatprep.subr.mxu0 0.0
  %747 = vmatpush1.msra.mxu0 %v25
  %748 = vmatprep.subr.mxu0 0.0
  %749 = vmatpush2.msra.mxu0 0.0
  %750 = vmatprep.subr.mxu0 0.0
  %751 = vmatpush2.msra.mxu0 0.0
  %752 = vmatprep.subr.mxu0 0.0
  %753 = vmatpush2.msra.mxu0 0.0
  %754 = vmatprep.subr.mxu0 0.0
  %755 = vmatpush2.msra.mxu0 0.0
  %756 = vmatprep.subr.mxu0 0.0
  %757 = vmatpush2.msra.mxu0 0.0
  %758 = vmatprep.subr.mxu0 0.0
  %759 = vmatpush2.msra.mxu0 0.0
  %760 = vmatprep.subr.mxu0 0.0
  %761 = vmatpush2.msra.mxu0 0.0
  %762 = vmatprep.subr.mxu0 0.0
  %763 = vmatpush2.msra.mxu0 0.0
  %764 = vmatprep.subr.mxu0 0.0
  %765 = vmatpush2.msra.mxu0 0.0
  %766 = vmatprep.subr.mxu0 0.0
  %767 = vmatpush2.msra.mxu0 0.0
  %768 = vmatprep.subr.mxu0 0.0
  %769 = vmatpush2.msra.mxu0 0.0
  %770 = vmatprep.subr.mxu0 0.0
  %771 = vmatpush2.msra.mxu0 0.0
  %772 = vmatprep.subr.mxu0 0.0
  %773 = vmatpush2.msra.mxu0 0.0
  %774 = vmatprep.subr.mxu0 0.0
  %775 = vmatpush2.msra.mxu0 0.0
  %776 = vmatprep.subr.mxu0 0.0
  %777 = vmatpush2.msra.mxu0 0.0
  %778 = vmatprep.subr.mxu0 0.0
  %779 = vmatpush2.msra.mxu0 0.0
  %780 = vmatprep.mubr.f32.mxu0 0.0
  %781 = vmatmul.mubr.f32.gmra.mxu0 %v714
  %v782 = vpop.f32.mrf.mxu0
  %v783 = vadd.f32 %v186, %v782
  %v784 = vpop.f32.mrf.mxu0
  %785 = vdwg.mxu0
  %v786 = vtanh.pop %v783
  %v787 = vld [vmem:[%s4] sm:$0x1]
  %v789 = vlaneseq
  %v790 = vshrl.u32 %v789, 7
  %v791 = vsub.s32 0, %v790
  %v792 = vrot.slane %v787, %v791
  %v794 = vmul.f32 %v786, %v792
  %v795 = vsel %vm194, %v794, 0.0
  %796 = vadd.xlane.f32.xlu0 %v795
  %v797 = vpop.xlane.xlu0 %796
  %v798 = vld [vmem:[#allocation2] sm:$0x1]
  %v800 = vlaneseq
  %v801 = vshrl.u32 %v800, 7
  %v802 = vsub.s32 0, %v801
  %v803 = vrot.slane %v798, %v802
  %v805 = vadd.f32 %v797, %v803
  %vm806 = vcmask 7168
  %807 = vst.msk [vmem:[%s6] sm:$0xff] %vm806, %v805
  // Predicated region
  $region26: #{cmapss_rnn_forward.1} parent=0 // pred_check
    _
  $region27: #{cmapss_rnn_forward.1} parent=0 // pred_check_branch
    %809 = sbr.rel (0) target = $region29
  $region28: #{cmapss_rnn_forward.1} parent=0 // pred_region
    _
  $region29: #{cmapss_rnn_forward.1} parent=0 // pred_fallthru
    _
  // Predicated region
  $region30: #{cmapss_rnn_forward.1} parent=0 // pred_check
    _
  $region31: #{cmapss_rnn_forward.1} parent=0 // pred_check_branch
    %811 = sbr.rel (0) target = $region33
  $region32: #{cmapss_rnn_forward.1} parent=0 // pred_region
    _
  $region33: #{cmapss_rnn_forward.1} parent=0 // pred_fallthru
    _

</llo_original>
